<compile_context>
chip_gen: v7x
topology: tpu7x:2x2x1
jax: 0.10.0
libtpu: 0.0.40
codegen_flags: <defaults>
</compile_context>

<pallas_src>
import jax
import jax.numpy as jnp
from jax.experimental import pallas as pl
from jax.experimental.pallas import tpu as pltpu


# ---------------------------------------------------------------------------
# Kernels
# ---------------------------------------------------------------------------

def _gate_up_kernel(x_ref, w1_ref, w2_ref, b1_ref, b2_ref, o_ref,
                    acc1_ref, acc2_ref):
    """o = (x@W1 + b1) * silu(x@W2 + b2); reduction over grid axis 2."""
    k = pl.program_id(2)

    @pl.when(k == 0)
    def _init():
        acc1_ref[...] = jnp.zeros_like(acc1_ref)
        acc2_ref[...] = jnp.zeros_like(acc2_ref)

    x = x_ref[...]  # shared LHS tile for both projections
    acc1_ref[...] += jnp.dot(x, w1_ref[...], preferred_element_type=jnp.float32)
    acc2_ref[...] += jnp.dot(x, w2_ref[...], preferred_element_type=jnp.float32)

    @pl.when(k == pl.num_programs(2) - 1)
    def _finalize():
        a1 = acc1_ref[...] + b1_ref[...].astype(jnp.float32)
        a2 = acc2_ref[...] + b2_ref[...].astype(jnp.float32)
        # silu(a2) = a2 * sigmoid(a2); exp rides the EUP slot.
        silu = a2 / (1.0 + jnp.exp(-a2))
        o_ref[...] = (a1 * silu).astype(o_ref.dtype)


def _proj_kernel(x_ref, w_ref, b_ref, o_ref, acc_ref):
    """o = x@W + b; reduction over grid axis 2."""
    k = pl.program_id(2)

    @pl.when(k == 0)
    def _init():
        acc_ref[...] = jnp.zeros_like(acc_ref)

    acc_ref[...] += jnp.dot(x_ref[...], w_ref[...],
                            preferred_element_type=jnp.float32)

    @pl.when(k == pl.num_programs(2) - 1)
    def _finalize():
        o_ref[...] = (acc_ref[...] + b_ref[...].astype(jnp.float32)
                      ).astype(o_ref.dtype)


# ---------------------------------------------------------------------------
# Tiling helpers
# ---------------------------------------------------------------------------

def _round_up(x, m):
    return ((x + m - 1) // m) * m


def _pick_tile(dim, target):
    """Largest tile <= target that divides dim and is a multiple of 128.

    If dim <= target, or no such divisor exists, use the full dim (a block
    equal to the full array dim always satisfies the (8,128) rule).
    """
    if dim <= target:
        return dim
    t = target - (target % 128)
    while t >= 128:
        if dim % t == 0:
            return t
        t -= 128
    return dim


# ---------------------------------------------------------------------------
# pallas_call wrappers
# ---------------------------------------------------------------------------

def _gated_up_matmul(x, w1, w2, b1, b2, out_dtype, tm, tn, tk):
    M, H = x.shape
    F = w1.shape[1]
    grid = (M // tm, F // tn, H // tk)
    return pl.pallas_call(
        _gate_up_kernel,
        out_shape=jax.ShapeDtypeStruct((M, F), out_dtype),
        grid_spec=pltpu.PrefetchScalarGridSpec(
            num_scalar_prefetch=0,
            grid=grid,
            in_specs=[
                pl.BlockSpec((tm, tk), lambda i, j, k: (i, k)),   # x
                pl.BlockSpec((tk, tn), lambda i, j, k: (k, j)),   # W1
                pl.BlockSpec((tk, tn), lambda i, j, k: (k, j)),   # W2
                pl.BlockSpec((1, tn), lambda i, j, k: (0, j)),    # b1
                pl.BlockSpec((1, tn), lambda i, j, k: (0, j)),    # b2
            ],
            out_specs=pl.BlockSpec((tm, tn), lambda i, j, k: (i, j)),
            scratch_shapes=[pltpu.VMEM((tm, tn), jnp.float32),
                            pltpu.VMEM((tm, tn), jnp.float32)],
        ),
        compiler_params=pltpu.CompilerParams(
            dimension_semantics=("parallel", "parallel", "arbitrary"),
            vmem_limit_bytes=64 << 20),
    )(x, w1, w2, b1, b2)


def _proj_matmul(x, w, b, out_dtype, tm, tn, tk):
    M, F = x.shape
    H = w.shape[1]
    grid = (M // tm, H // tn, F // tk)
    return pl.pallas_call(
        _proj_kernel,
        out_shape=jax.ShapeDtypeStruct((M, H), out_dtype),
        grid_spec=pltpu.PrefetchScalarGridSpec(
            num_scalar_prefetch=0,
            grid=grid,
            in_specs=[
                pl.BlockSpec((tm, tk), lambda i, j, k: (i, k)),   # intermediate
                pl.BlockSpec((tk, tn), lambda i, j, k: (k, j)),   # c_proj weight
                pl.BlockSpec((1, tn), lambda i, j, k: (0, j)),    # c_proj bias
            ],
            out_specs=pl.BlockSpec((tm, tn), lambda i, j, k: (i, j)),
            scratch_shapes=[pltpu.VMEM((tm, tn), jnp.float32)],
        ),
        compiler_params=pltpu.CompilerParams(
            dimension_semantics=("parallel", "parallel", "arbitrary"),
            vmem_limit_bytes=64 << 20),
    )(x, w, b)


def qwen_mlp(hidden_states, w1, w2, c_proj_w,
             b1=None, b2=None, c_proj_b=None, *,
             block_m=512, block_n=256, block_k=512):
    """QWenMLP forward: c_proj(w1(x) * silu(w2(x))).

    hidden_states: (..., hidden)
    w1, w2       : (hidden, ffn_hidden//2)   -- transpose of torch Linear.weight
    c_proj_w     : (ffn_hidden//2, hidden)
    b1, b2, c_proj_b: optional 1-D biases (None == no_bias config).
    """
    orig_shape = hidden_states.shape
    H = orig_shape[-1]
    F = w1.shape[1]
    assert w1.shape == (H, F) and w2.shape == (H, F) and c_proj_w.shape == (F, H)

    dtype = hidden_states.dtype
    M = 1
    for s in orig_shape[:-1]:
        M *= s
    x2d = hidden_states.reshape(M, H)

    # Qwen default is no_bias=True; zero biases keep the kernel signature
    # fixed and are numerically identical (added only in the epilogue).
    if b1 is None:
        b1 = jnp.zeros((F,), dtype=jnp.float32)
    if b2 is None:
        b2 = jnp.zeros((F,), dtype=jnp.float32)
    if c_proj_b is None:
        c_proj_b = jnp.zeros((H,), dtype=jnp.float32)
    b1 = b1.reshape(1, F)
    b2 = b2.reshape(1, F)
    c_proj_b = c_proj_b.reshape(1, H)

    # Row tile: large (VMEM-sized) but sublane-aligned; ragged M is
    # zero-padded so we never fall back to "block = whole array" on M.
    row_align = 16 if dtype == jnp.bfloat16 else 8
    tm = min(block_m, _round_up(M, row_align))
    Mp = _round_up(M, tm)
    if Mp != M:
        x2d = jnp.pad(x2d, ((0, Mp - M), (0, 0)))

    tk_h = _pick_tile(H, block_k)   # reduction over hidden (gate/up)
    tn_f = _pick_tile(F, block_n)   # ffn-output tile
    tk_f = _pick_tile(F, block_k)   # reduction over ffn (c_proj)
    tn_h = _pick_tile(H, block_n)   # hidden-output tile

    inter = _gated_up_matmul(x2d, w1, w2, b1, b2, dtype, tm, tn_f, tk_h)
    out = _proj_matmul(inter, c_proj_w, c_proj_b, dtype, tm, tn_h, tk_f)

    if Mp != M:
        out = out[:M]
    return out.reshape(orig_shape)


# ---------------------------------------------------------------------------
# Self-test
# ---------------------------------------------------------------------------

if __name__ == "__main__":
    key = jax.random.PRNGKey(0)
    batch, seq, hidden = 2, 8, 32
    ffn_hidden = 128                  # config.ffn_hidden_size
    ff_dim = ffn_hidden // 2          # 64

    k1, k2, k3, k4 = jax.random.split(key, 4)
    x = jax.random.normal(k1, (batch, seq, hidden), dtype=jnp.float32)
    # Weights in (in, out) layout; scaled like a typical init.
    w1 = jax.random.normal(k2, (hidden, ff_dim), dtype=jnp.float32) * 0.05
    w2 = jax.random.normal(k3, (hidden, ff_dim), dtype=jnp.float32) * 0.05
    cp = jax.random.normal(k4, (ff_dim, hidden), dtype=jnp.float32) * 0.05

    out = qwen_mlp(x, w1, w2, cp)     # no_bias=True path (Qwen default)
    out = jax.block_until_ready(out)

    # Pure-JAX reference.
    hp = jax.lax.Precision.HIGHEST
    a1 = jnp.dot(x, w1, precision=hp)
    a2 = jnp.dot(x, w2, precision=hp)
    mid = a1 * (a2 / (1.0 + jnp.exp(-a2)))
    ref = jnp.dot(mid, cp, precision=hp)

    assert out.shape == ref.shape
    assert jnp.allclose(out, ref, atol=1e-2, rtol=1e-2), "mismatch vs reference"

    # TODO(synk): for full-model use, fuse the preceding RMSNorm into the
    # gate/up kernel's LHS load to save one HBM round-trip of the activations.
    print("KERNEL_OK")
</pallas_src>

<mosaic_0001>
module attributes {stable_mosaic.version = 11 : i64} {
  func.func @_gate_up_kernel(%arg0: i32, %arg1: i32, %arg2: i32, %arg3: memref<16x32xf32, #tpu.memory_space<vmem>>, %arg4: memref<32x64xf32, #tpu.memory_space<vmem>>, %arg5: memref<32x64xf32, #tpu.memory_space<vmem>>, %arg6: memref<1x64xf32, #tpu.memory_space<vmem>>, %arg7: memref<1x64xf32, #tpu.memory_space<vmem>>, %arg8: memref<16x64xf32, #tpu.memory_space<vmem>>, %arg9: memref<16x64xf32, #tpu.memory_space<vmem>>, %arg10: memref<16x64xf32, #tpu.memory_space<vmem>>) attributes {dimension_semantics = [#tpu.dimension_semantics<parallel>, #tpu.dimension_semantics<parallel>, #tpu.dimension_semantics<arbitrary>], iteration_bounds = array<i64: 1, 1, 1>, scalar_prefetch = 0 : i64, scratch_operands = 2 : i64, tpu.core_type = #tpu.core_type<tc>, window_params = [{transform_indices = @transform_0, window_bounds = array<i64: 16, 32>}, {transform_indices = @transform_1, window_bounds = array<i64: 32, 64>}, {transform_indices = @transform_2, window_bounds = array<i64: 32, 64>}, {transform_indices = @transform_3, window_bounds = array<i64: 1, 64>}, {transform_indices = @transform_4, window_bounds = array<i64: 1, 64>}, {transform_indices = @transform_5, window_bounds = array<i64: 16, 64>}]} {
    %c0_i32 = arith.constant 0 : i32
    %0 = arith.cmpi eq, %arg2, %c0_i32 : i32
    %1 = arith.extui %0 : i1 to i32
    %c0_i32_0 = arith.constant 0 : i32
    %2 = arith.cmpi ne, %1, %c0_i32_0 : i32
    scf.if %2 {
      %cst_17 = arith.constant 0.000000e+00 : f32
      %17 = vector.broadcast %cst_17 : f32 to vector<16x64xf32>
      %c0_18 = arith.constant 0 : index
      %c0_19 = arith.constant 0 : index
      %18 = vector.load %arg9[%c0_18, %c0_19] : memref<16x64xf32, #tpu.memory_space<vmem>>, vector<16x64xf32>
      tpu.vector_store %arg9[%c0_18, %c0_19], %17 {strides = array<i32>} : memref<16x64xf32, #tpu.memory_space<vmem>>, vector<16x64xf32>,
      %cst_20 = arith.constant 0.000000e+00 : f32
      %19 = vector.broadcast %cst_20 : f32 to vector<16x64xf32>
      %c0_21 = arith.constant 0 : index
      %c0_22 = arith.constant 0 : index
      %20 = vector.load %arg10[%c0_21, %c0_22] : memref<16x64xf32, #tpu.memory_space<vmem>>, vector<16x64xf32>
      tpu.vector_store %arg10[%c0_21, %c0_22], %19 {strides = array<i32>} : memref<16x64xf32, #tpu.memory_space<vmem>>, vector<16x64xf32>,
    } else {
    }
    %c0 = arith.constant 0 : index
    %c0_1 = arith.constant 0 : index
    %3 = vector.load %arg3[%c0, %c0_1] : memref<16x32xf32, #tpu.memory_space<vmem>>, vector<16x32xf32>
    %c0_2 = arith.constant 0 : index
    %c0_3 = arith.constant 0 : index
    %4 = vector.load %arg9[%c0_2, %c0_3] : memref<16x64xf32, #tpu.memory_space<vmem>>, vector<16x64xf32>
    %c0_4 = arith.constant 0 : index
    %c0_5 = arith.constant 0 : index
    %5 = vector.load %arg4[%c0_4, %c0_5] : memref<32x64xf32, #tpu.memory_space<vmem>>, vector<32x64xf32>
    %cst = arith.constant dense<0.000000e+00> : vector<16x64xf32>
    %6 = tpu.matmul %3, %5, %cst {dimension_numbers = #tpu.dot_dimension_numbers<[1], [0], [0], [1], [0, 0, 1, 1], [], []>} : vector<16x32xf32>, vector<32x64xf32>, vector<16x64xf32> -> vector<16x64xf32>
    %7 = arith.addf %4, %6 : vector<16x64xf32>
    %c0_6 = arith.constant 0 : index
    %c0_7 = arith.constant 0 : index
    %8 = vector.load %arg9[%c0_6, %c0_7] : memref<16x64xf32, #tpu.memory_space<vmem>>, vector<16x64xf32>
    tpu.vector_store %arg9[%c0_6, %c0_7], %7 {strides = array<i32>} : memref<16x64xf32, #tpu.memory_space<vmem>>, vector<16x64xf32>,
    %c0_8 = arith.constant 0 : index
    %c0_9 = arith.constant 0 : index
    %9 = vector.load %arg10[%c0_8, %c0_9] : memref<16x64xf32, #tpu.memory_space<vmem>>, vector<16x64xf32>
    %c0_10 = arith.constant 0 : index
    %c0_11 = arith.constant 0 : index
    %10 = vector.load %arg5[%c0_10, %c0_11] : memref<32x64xf32, #tpu.memory_space<vmem>>, vector<32x64xf32>
    %cst_12 = arith.constant dense<0.000000e+00> : vector<16x64xf32>
    %11 = tpu.matmul %3, %10, %cst_12 {dimension_numbers = #tpu.dot_dimension_numbers<[1], [0], [0], [1], [0, 0, 1, 1], [], []>} : vector<16x32xf32>, vector<32x64xf32>, vector<16x64xf32> -> vector<16x64xf32>
    %12 = arith.addf %9, %11 : vector<16x64xf32>
    %c0_13 = arith.constant 0 : index
    %c0_14 = arith.constant 0 : index
    %13 = vector.load %arg10[%c0_13, %c0_14] : memref<16x64xf32, #tpu.memory_space<vmem>>, vector<16x64xf32>
    tpu.vector_store %arg10[%c0_13, %c0_14], %12 {strides = array<i32>} : memref<16x64xf32, #tpu.memory_space<vmem>>, vector<16x64xf32>,
    %c0_i32_15 = arith.constant 0 : i32
    %14 = arith.cmpi eq, %arg2, %c0_i32_15 : i32
    %15 = arith.extui %14 : i1 to i32
    %c0_i32_16 = arith.constant 0 : i32
    %16 = arith.cmpi ne, %15, %c0_i32_16 : i32
    scf.if %16 {
      %c0_17 = arith.constant 0 : index
      %c0_18 = arith.constant 0 : index
      %17 = vector.load %arg9[%c0_17, %c0_18] : memref<16x64xf32, #tpu.memory_space<vmem>>, vector<16x64xf32>
      %c0_19 = arith.constant 0 : index
      %c0_20 = arith.constant 0 : index
      %18 = vector.load %arg6[%c0_19, %c0_20] : memref<1x64xf32, #tpu.memory_space<vmem>>, vector<1x64xf32>
      %19 = vector.broadcast %18 : vector<1x64xf32> to vector<16x64xf32>
      %20 = arith.addf %17, %19 : vector<16x64xf32>
      %c0_21 = arith.constant 0 : index
      %c0_22 = arith.constant 0 : index
      %21 = vector.load %arg10[%c0_21, %c0_22] : memref<16x64xf32, #tpu.memory_space<vmem>>, vector<16x64xf32>
      %c0_23 = arith.constant 0 : index
      %c0_24 = arith.constant 0 : index
      %22 = vector.load %arg7[%c0_23, %c0_24] : memref<1x64xf32, #tpu.memory_space<vmem>>, vector<1x64xf32>
      %23 = vector.broadcast %22 : vector<1x64xf32> to vector<16x64xf32>
      %24 = arith.addf %21, %23 : vector<16x64xf32>
      %cst_25 = arith.constant 0.000000e+00 : f32
      %25 = vector.broadcast %cst_25 : f32 to vector<16x64xf32>
      %26 = arith.subf %25, %24 : vector<16x64xf32>
      %27 = math.exp %26 : vector<16x64xf32>
      %cst_26 = arith.constant 1.000000e+00 : f32
      %28 = vector.broadcast %cst_26 : f32 to vector<16x64xf32>
      %29 = arith.addf %28, %27 : vector<16x64xf32>
      %30 = arith.divf %24, %29 : vector<16x64xf32>
      %31 = arith.mulf %20, %30 : vector<16x64xf32>
      %c0_27 = arith.constant 0 : index
      %c0_28 = arith.constant 0 : index
      %32 = vector.load %arg8[%c0_27, %c0_28] : memref<16x64xf32, #tpu.memory_space<vmem>>, vector<16x64xf32>
      tpu.vector_store %arg8[%c0_27, %c0_28], %31 {strides = array<i32>} : memref<16x64xf32, #tpu.memory_space<vmem>>, vector<16x64xf32>,
    } else {
    }
    return
  }
  func.func @transform_0(%arg0: i32, %arg1: i32, %arg2: i32) -> (i32, i32) {
    %c0_i32 = arith.constant 0 : i32
    return %arg0, %arg2 : i32, i32
  }
  func.func @transform_1(%arg0: i32, %arg1: i32, %arg2: i32) -> (i32, i32) {
    %c0_i32 = arith.constant 0 : i32
    return %arg2, %arg1 : i32, i32
  }
  func.func @transform_2(%arg0: i32, %arg1: i32, %arg2: i32) -> (i32, i32) {
    %c0_i32 = arith.constant 0 : i32
    return %arg2, %arg1 : i32, i32
  }
  func.func @transform_3(%arg0: i32, %arg1: i32, %arg2: i32) -> (i32, i32) {
    %c0_i32 = arith.constant 0 : i32
    %c0_i32_0 = arith.constant 0 : i32
    return %c0_i32, %arg1 : i32, i32
  }
  func.func @transform_4(%arg0: i32, %arg1: i32, %arg2: i32) -> (i32, i32) {
    %c0_i32 = arith.constant 0 : i32
    %c0_i32_0 = arith.constant 0 : i32
    return %c0_i32, %arg1 : i32, i32
  }
  func.func @transform_5(%arg0: i32, %arg1: i32, %arg2: i32) -> (i32, i32) {
    %c0_i32 = arith.constant 0 : i32
    return %arg0, %arg1 : i32, i32
  }
}

</mosaic_0001>

<llo_original>
// kernel: tpu_custom_call.1
$region0: #{tpu_custom_call.1}
  #allocation0 [shape = 'u32[]', space=smem, size = 0x4, offset = 0x4, fixed_abs, tag = 'smem constant byte address 0x4 - core index']
  #allocation1 [shape = 'u32[144,128]{1,0:T(1,128)}', space=vmem, size = 0x12000, scoped, tag = 'internal scratch']
  #allocation2 [shape = 'f32[16,64]{1,0:T(8,128)}', space=vmem, size = 0x2000, scoped, tag = 'scratch operand']
  #allocation3 [shape = 'f32[16,64]{1,0:T(8,128)}', space=vmem, size = 0x2000, scoped, tag = 'scratch operand']
  %s0 = inlined_call_operand.hbm [shape: f32[16,32], index: 0, kind: input, shape index: {}]
  %s1 = inlined_call_operand.hbm [shape: f32[32,64], index: 1, kind: input, shape index: {}]
  %s2 = inlined_call_operand.hbm [shape: f32[32,64], index: 2, kind: input, shape index: {}]
  %s3 = inlined_call_operand.hbm [shape: f32[1,64], index: 3, kind: input, shape index: {}]
  %s4 = inlined_call_operand.hbm [shape: f32[1,64], index: 4, kind: input, shape index: {}]
  %s5 = inlined_call_operand.hbm [shape: f32[16,64], index: 5, kind: output, shape index: {}]
  %s6 = sld [smem:[#allocation0]]
  $region58: #{tpu_custom_call.1} parent=0
    _
  %s8 = ssub.s32 1, %s6
  %s9 = scalar_select 0, %s8, %s6
  $region1: #{tpu_custom_call.1} parent=0
    #allocation4 [shape = 'u8[8192]{0}', space=vmem, size = 0x2000, scoped, tag = 'input window, operand 0, single buffered']
    #allocation5 [shape = 's32[1]{0}', space=sflag, size = 0x4, scoped, tag = 'scoped memory for tpu_custom_call.1']
    #allocation6 [shape = 's32[1]{0}', space=sflag, size = 0x4, scoped, tag = 'scoped memory for tpu_custom_call.1']
    #allocation7 [shape = 'u8[16384]{0}', space=vmem, size = 0x4000, scoped, tag = 'input window, operand 1, single buffered']
    #allocation8 [shape = 's32[1]{0}', space=sflag, size = 0x4, scoped, tag = 'scoped memory for tpu_custom_call.1']
    #allocation9 [shape = 'u8[16384]{0}', space=vmem, size = 0x4000, scoped, tag = 'input window, operand 2, single buffered']
    #allocation10 [shape = 'u8[512]{0}', space=vmem, size = 0x400, scoped, tag = 'input window, operand 3, single buffered']
    #allocation11 [shape = 's32[1]{0}', space=sflag, size = 0x4, scoped, tag = 'scoped memory for tpu_custom_call.1']
    #allocation12 [shape = 'u8[512]{0}', space=vmem, size = 0x400, scoped, tag = 'input window, operand 4, single buffered']
    #allocation13 [shape = 'u8[8192]{0}', space=vmem, size = 0x2000, scoped, tag = 'output window, operand 0, single buffered']
    %10 = vsyncpa [#allocation5], 0
    %11 = vsyncpa [#allocation8], 0
    %12 = vsyncpa [#allocation11], 0
    %13 = vsyncpa [#allocation6], 0
    // Predicated region
    $region2: #{tpu_custom_call.1} parent=1 // pred_check
      _
    $region3: #{tpu_custom_call.1} parent=1 // pred_check_branch
      %15 = sbr.rel (0) target = $region5
    $region4: #{tpu_custom_call.1} parent=1 // pred_region
      %s17 = ssub.s32 256, 256
      %18 = vsyncadd [#allocation5], %s17
      %s19 = sshll.u32 [#allocation4], 4
      %s20 = int_to_ptr.vmem [resolvable:$true] %s19
      %25 = dma.hbm_to_vmem [thread:$0]  %s0, 256, %s20, [#allocation5], 128, 128, 8
    $region5: #{tpu_custom_call.1} parent=1 // pred_fallthru
      _
    // Predicated region
    $region6: #{tpu_custom_call.1} parent=1 // pred_check
      _
    $region7: #{tpu_custom_call.1} parent=1 // pred_check_branch
      %27 = sbr.rel (0) target = $region9
    $region8: #{tpu_custom_call.1} parent=1 // pred_region
      %s29 = ssub.s32 512, 512
      %30 = vsyncadd [#allocation8], %s29
      %s31 = sshll.u32 [#allocation7], 4
      %s32 = int_to_ptr.vmem [resolvable:$true] %s31
      %37 = dma.hbm_to_vmem [thread:$0]  %s1, 512, %s32, [#allocation8], 128, 128, 8
    $region9: #{tpu_custom_call.1} parent=1 // pred_fallthru
      _
    // Predicated region
    $region10: #{tpu_custom_call.1} parent=1 // pred_check
      _
    $region11: #{tpu_custom_call.1} parent=1 // pred_check_branch
      %39 = sbr.rel (0) target = $region13
    $region12: #{tpu_custom_call.1} parent=1 // pred_region
      %s41 = ssub.s32 512, 512
      %42 = vsyncadd [#allocation8], %s41
      %s43 = sshll.u32 [#allocation9], 4
      %s44 = int_to_ptr.vmem [resolvable:$true] %s43
      %49 = dma.hbm_to_vmem [thread:$0]  %s2, 512, %s44, [#allocation8], 128, 128, 8
    $region13: #{tpu_custom_call.1} parent=1 // pred_fallthru
      _
    // Predicated region
    $region14: #{tpu_custom_call.1} parent=1 // pred_check
      _
    $region15: #{tpu_custom_call.1} parent=1 // pred_check_branch
      %51 = sbr.rel (0) target = $region17
    $region16: #{tpu_custom_call.1} parent=1 // pred_region
      %s53 = ssub.s32 16, 16
      %54 = vsyncadd [#allocation11], %s53
      %s56 = sshll.u32 [#allocation10], 4
      %s57 = int_to_ptr.vmem [resolvable:$true] %s56
      %59 = dma.hbm_to_vmem [thread:$0]  %s3, 16, %s57, [#allocation11]
    $region17: #{tpu_custom_call.1} parent=1 // pred_fallthru
      _
    // Predicated region
    $region18: #{tpu_custom_call.1} parent=1 // pred_check
      _
    $region19: #{tpu_custom_call.1} parent=1 // pred_check_branch
      %61 = sbr.rel (0) target = $region21
    $region20: #{tpu_custom_call.1} parent=1 // pred_region
      %s63 = ssub.s32 16, 16
      %64 = vsyncadd [#allocation11], %s63
      %s66 = sshll.u32 [#allocation12], 4
      %s67 = int_to_ptr.vmem [resolvable:$true] %s66
      %69 = dma.hbm_to_vmem [thread:$0]  %s4, 16, %s67, [#allocation11]
    $region21: #{tpu_custom_call.1} parent=1 // pred_fallthru
      _
    // Predicated region
    $region22: #{tpu_custom_call.1} parent=1 // pred_check
      _
    $region23: #{tpu_custom_call.1} parent=1 // pred_check_branch
      %71 = sbr.rel (0) target = $region25
    $region24: #{tpu_custom_call.1} parent=1 // pred_region
      %72 = dma.done [#allocation5], 256
    $region25: #{tpu_custom_call.1} parent=1 // pred_fallthru
      _
    // Predicated region
    $region26: #{tpu_custom_call.1} parent=1 // pred_check
      _
    $region27: #{tpu_custom_call.1} parent=1 // pred_check_branch
      %74 = sbr.rel (0) target = $region29
    $region28: #{tpu_custom_call.1} parent=1 // pred_region
      %75 = dma.done [#allocation8], 512
    $region29: #{tpu_custom_call.1} parent=1 // pred_fallthru
      _
    // Predicated region
    $region30: #{tpu_custom_call.1} parent=1 // pred_check
      _
    $region31: #{tpu_custom_call.1} parent=1 // pred_check_branch
      %77 = sbr.rel (0) target = $region33
    $region32: #{tpu_custom_call.1} parent=1 // pred_region
      %78 = dma.done [#allocation8], 512
    $region33: #{tpu_custom_call.1} parent=1 // pred_fallthru
      _
    // Predicated region
    $region34: #{tpu_custom_call.1} parent=1 // pred_check
      _
    $region35: #{tpu_custom_call.1} parent=1 // pred_check_branch
      %80 = sbr.rel (0) target = $region37
    $region36: #{tpu_custom_call.1} parent=1 // pred_region
      %81 = dma.done [#allocation11], 16
    $region37: #{tpu_custom_call.1} parent=1 // pred_fallthru
      _
    // Predicated region
    $region38: #{tpu_custom_call.1} parent=1 // pred_check
      _
    $region39: #{tpu_custom_call.1} parent=1 // pred_check_branch
      %83 = sbr.rel (0) target = $region41
    $region40: #{tpu_custom_call.1} parent=1 // pred_region
      %84 = dma.done [#allocation11], 16
    $region41: #{tpu_custom_call.1} parent=1 // pred_fallthru
      _
    %p85 = scmp.eq.s32.totalorder 0, 0
    // Predicated region
    $region42: #{tpu_custom_call.1} parent=1 // pred_check
      %p86 = pneg %p85
    $region43: #{tpu_custom_call.1} parent=1 // pred_check_branch
      %88 = sbr.rel (%p86) target = $region45
    $region44: #{tpu_custom_call.1} parent=1 // pred_region
      %vm89 = vcmask 523264
      %90 = vst.msk [vmem:[#allocation2] sm:$0xff] %vm89, 0.0
      %91 = vst.msk [vmem:[#allocation2 + $0x8] sm:$0xff] %vm89, 0.0
      %92 = vst.msk [vmem:[#allocation3] sm:$0xff] %vm89, 0.0
      %93 = vst.msk [vmem:[#allocation3 + $0x8] sm:$0xff] %vm89, 0.0
    $region45: #{tpu_custom_call.1} parent=1 // pred_fallthru
      _
    %v94 = vld [vmem:[#allocation4] sm:$0xff]
    %v95 = vld [vmem:[#allocation4 + $0x8] sm:$0xff]
    %v96 = vld [vmem:[#allocation2] sm:$0xff]
    %v97 = vld [vmem:[#allocation2 + $0x8] sm:$0xff]
    %v98 = vld [vmem:[#allocation7] sm:$0xff]
    %v99 = vld [vmem:[#allocation7 + $0x8] sm:$0xff]
    %v100 = vld [vmem:[#allocation7 + $0x10] sm:$0xff]
    %v101 = vld [vmem:[#allocation7 + $0x18] sm:$0xff]
    %vm102 = vcmask 261120
    %v104 = vsel %vm102, %v94, 0
    %v107 = vsel %vm102, %v95, 0
    %109 = vmatprep.subr.mxu0 0.0
    %110 = vmatpush1.msra.mxu0 %v98
    %111 = vmatprep.subr.mxu0 0.0
    %112 = vmatpush1.msra.mxu0 %v99
    %113 = vmatprep.subr.mxu0 0.0
    %114 = vmatpush1.msra.mxu0 %v100
    %115 = vmatprep.subr.mxu0 0.0
    %116 = vmatpush1.msra.mxu0 %v101
    %117 = vmatprep.subr.mxu0 0.0
    %118 = vmatpush1.msra.mxu0 0.0
    %119 = vmatprep.subr.mxu0 0.0
    %120 = vmatpush1.msra.mxu0 0.0
    %121 = vmatprep.subr.mxu0 0.0
    %122 = vmatpush1.msra.mxu0 0.0
    %123 = vmatprep.subr.mxu0 0.0
    %124 = vmatpush1.msra.mxu0 0.0
    %125 = vmatprep.subr.mxu0 0.0
    %126 = vmatpush1.msra.mxu0 0.0
    %127 = vmatprep.subr.mxu0 0.0
    %128 = vmatpush1.msra.mxu0 0.0
    %129 = vmatprep.subr.mxu0 0.0
    %130 = vmatpush1.msra.mxu0 0.0
    %131 = vmatprep.subr.mxu0 0.0
    %132 = vmatpush1.msra.mxu0 0.0
    %133 = vmatprep.subr.mxu0 0.0
    %134 = vmatpush1.msra.mxu0 0.0
    %135 = vmatprep.subr.mxu0 0.0
    %136 = vmatpush1.msra.mxu0 0.0
    %137 = vmatprep.subr.mxu0 0.0
    %138 = vmatpush1.msra.mxu0 0.0
    %139 = vmatprep.subr.mxu0 0.0
    %140 = vmatpush1.msra.mxu0 0.0
    %141 = vmatprep.subr.mxu0 0.0
    %142 = vmatpush1.msra.mxu0 0.0
    %143 = vmatprep.subr.mxu0 0.0
    %144 = vmatpush1.msra.mxu0 0.0
    %145 = vmatprep.subr.mxu0 0.0
    %146 = vmatpush1.msra.mxu0 0.0
    %147 = vmatprep.subr.mxu0 0.0
    %148 = vmatpush1.msra.mxu0 0.0
    %149 = vmatprep.subr.mxu0 0.0
    %150 = vmatpush1.msra.mxu0 0.0
    %151 = vmatprep.subr.mxu0 0.0
    %152 = vmatpush1.msra.mxu0 0.0
    %153 = vmatprep.subr.mxu0 0.0
    %154 = vmatpush1.msra.mxu0 0.0
    %155 = vmatprep.subr.mxu0 0.0
    %156 = vmatpush1.msra.mxu0 0.0
    %157 = vmatprep.subr.mxu0 0.0
    %158 = vmatpush1.msra.mxu0 0.0
    %159 = vmatprep.subr.mxu0 0.0
    %160 = vmatpush1.msra.mxu0 0.0
    %161 = vmatprep.subr.mxu0 0.0
    %162 = vmatpush1.msra.mxu0 0.0
    %163 = vmatprep.subr.mxu0 0.0
    %164 = vmatpush1.msra.mxu0 0.0
    %165 = vmatprep.subr.mxu0 0.0
    %166 = vmatpush1.msra.mxu0 0.0
    %167 = vmatprep.subr.mxu0 0.0
    %168 = vmatpush1.msra.mxu0 0.0
    %169 = vmatprep.subr.mxu0 0.0
    %170 = vmatpush1.msra.mxu0 0.0
    %171 = vmatprep.subr.mxu0 0.0
    %172 = vmatpush1.msra.mxu0 0.0
    %173 = vmatprep.mubr.f32.mxu0 0.0
    %174 = vmatmul.mubr.f32.gmra.mrb[0].mxu0 %v104
    %v175 = vpop.f32.mrb[0].mxu0
    %v176 = vadd.f32 0.0, %v175
    %v177 = vpop.f32.mrb[0].mxu0
    %178 = vmatprep.mubr.f32.mxu0 0.0
    %179 = vmatmul.mubr.f32.gmra.mrb[0].mxu0 %v107
    %v180 = vpop.f32.mrb[0].mxu0
    %v181 = vadd.f32 0.0, %v180
    %v182 = vpop.f32.mrb[0].mxu0
    %183 = vdwg.mxu0
    %v184 = vadd.f32 %v96, %v176
    %v185 = vadd.f32 %v97, %v181
    %vm186 = vcmask 523264
    %187 = vst.msk [vmem:[#allocation2] sm:$0xff] %vm186, %v184
    %188 = vst.msk [vmem:[#allocation2 + $0x8] sm:$0xff] %vm186, %v185
    %v189 = vld [vmem:[#allocation3] sm:$0xff]
    %v190 = vld [vmem:[#allocation3 + $0x8] sm:$0xff]
    %v191 = vld [vmem:[#allocation9] sm:$0xff]
    %v192 = vld [vmem:[#allocation9 + $0x8] sm:$0xff]
    %v193 = vld [vmem:[#allocation9 + $0x10] sm:$0xff]
    %v194 = vld [vmem:[#allocation9 + $0x18] sm:$0xff]
    %195 = vmatprep.subr.mxu0 0.0
    %196 = vmatpush1.msra.mxu0 %v191
    %197 = vmatprep.subr.mxu0 0.0
    %198 = vmatpush1.msra.mxu0 %v192
    %199 = vmatprep.subr.mxu0 0.0
    %200 = vmatpush1.msra.mxu0 %v193
    %201 = vmatprep.subr.mxu0 0.0
    %202 = vmatpush1.msra.mxu0 %v194
    %203 = vmatprep.subr.mxu0 0.0
    %204 = vmatpush1.msra.mxu0 0.0
    %205 = vmatprep.subr.mxu0 0.0
    %206 = vmatpush1.msra.mxu0 0.0
    %207 = vmatprep.subr.mxu0 0.0
    %208 = vmatpush1.msra.mxu0 0.0
    %209 = vmatprep.subr.mxu0 0.0
    %210 = vmatpush1.msra.mxu0 0.0
    %211 = vmatprep.subr.mxu0 0.0
    %212 = vmatpush1.msra.mxu0 0.0
    %213 = vmatprep.subr.mxu0 0.0
    %214 = vmatpush1.msra.mxu0 0.0
    %215 = vmatprep.subr.mxu0 0.0
    %216 = vmatpush1.msra.mxu0 0.0
    %217 = vmatprep.subr.mxu0 0.0
    %218 = vmatpush1.msra.mxu0 0.0
    %219 = vmatprep.subr.mxu0 0.0
    %220 = vmatpush1.msra.mxu0 0.0
    %221 = vmatprep.subr.mxu0 0.0
    %222 = vmatpush1.msra.mxu0 0.0
    %223 = vmatprep.subr.mxu0 0.0
    %224 = vmatpush1.msra.mxu0 0.0
    %225 = vmatprep.subr.mxu0 0.0
    %226 = vmatpush1.msra.mxu0 0.0
    %227 = vmatprep.subr.mxu0 0.0
    %228 = vmatpush1.msra.mxu0 0.0
    %229 = vmatprep.subr.mxu0 0.0
    %230 = vmatpush1.msra.mxu0 0.0
    %231 = vmatprep.subr.mxu0 0.0
    %232 = vmatpush1.msra.mxu0 0.0
    %233 = vmatprep.subr.mxu0 0.0
    %234 = vmatpush1.msra.mxu0 0.0
    %235 = vmatprep.subr.mxu0 0.0
    %236 = vmatpush1.msra.mxu0 0.0
    %237 = vmatprep.subr.mxu0 0.0
    %238 = vmatpush1.msra.mxu0 0.0
    %239 = vmatprep.subr.mxu0 0.0
    %240 = vmatpush1.msra.mxu0 0.0
    %241 = vmatprep.subr.mxu0 0.0
    %242 = vmatpush1.msra.mxu0 0.0
    %243 = vmatprep.subr.mxu0 0.0
    %244 = vmatpush1.msra.mxu0 0.0
    %245 = vmatprep.subr.mxu0 0.0
    %246 = vmatpush1.msra.mxu0 0.0
    %247 = vmatprep.subr.mxu0 0.0
    %248 = vmatpush1.msra.mxu0 0.0
    %249 = vmatprep.subr.mxu0 0.0
    %250 = vmatpush1.msra.mxu0 0.0
    %251 = vmatprep.subr.mxu0 0.0
    %252 = vmatpush1.msra.mxu0 0.0
    %253 = vmatprep.subr.mxu0 0.0
    %254 = vmatpush1.msra.mxu0 0.0
    %255 = vmatprep.subr.mxu0 0.0
    %256 = vmatpush1.msra.mxu0 0.0
    %257 = vmatprep.subr.mxu0 0.0
    %258 = vmatpush1.msra.mxu0 0.0
    %259 = vmatprep.mubr.f32.mxu0 0.0
    %260 = vmatmul.mubr.f32.gmra.mrb[0].mxu0 %v104
    %v261 = vpop.f32.mrb[0].mxu0
    %v262 = vadd.f32 0.0, %v261
    %v263 = vpop.f32.mrb[0].mxu0
    %264 = vmatprep.mubr.f32.mxu0 0.0
    %265 = vmatmul.mubr.f32.gmra.mrb[0].mxu0 %v107
    %v266 = vpop.f32.mrb[0].mxu0
    %v267 = vadd.f32 0.0, %v266
    %v268 = vpop.f32.mrb[0].mxu0
    %269 = vdwg.mxu0
    %v270 = vadd.f32 %v189, %v262
    %v271 = vadd.f32 %v190, %v267
    %272 = vst.msk [vmem:[#allocation3] sm:$0xff] %vm186, %v270
    %273 = vst.msk [vmem:[#allocation3 + $0x8] sm:$0xff] %vm186, %v271
    // Predicated region
    $region46: #{tpu_custom_call.1} parent=1 // pred_check
      %p274 = pneg %p85
    $region47: #{tpu_custom_call.1} parent=1 // pred_check_branch
      %276 = sbr.rel (%p274) target = $region49
    $region48: #{tpu_custom_call.1} parent=1 // pred_region
      %v277 = vld [vmem:[#allocation2] sm:$0xff]
      %v278 = vld [vmem:[#allocation2 + $0x8] sm:$0xff]
      %v279 = vld [vmem:[#allocation10] sm:$0x1]
      %v281 = vlaneseq
      %v282 = vshrl.u32 %v281, 7
      %v283 = vsub.s32 0, %v282
      %v284 = vrot.slane %v279, %v283
      %v286 = vadd.f32 %v277, %v284
      %v287 = vadd.f32 %v278, %v284
      %v288 = vld [vmem:[#allocation3] sm:$0xff]
      %v289 = vld [vmem:[#allocation3 + $0x8] sm:$0xff]
      %v290 = vld [vmem:[#allocation12] sm:$0x1]
      %v292 = vlaneseq
      %v293 = vshrl.u32 %v292, 7
      %v294 = vsub.s32 0, %v293
      %v295 = vrot.slane %v290, %v294
      %v297 = vadd.f32 %v288, %v295
      %v298 = vadd.f32 %v289, %v295
      %v299 = vsub.f32 0.0, %v297
      %v300 = vsub.f32 0.0, %v298
      %v301 = vmul.f32 %v299, 1.442695
      %v302 = vpow.pop %v301
      %v303 = vmul.f32 %v300, 1.442695
      %v304 = vpow.pop %v303
      %v305 = vadd.f32 %v302, 1.0
      %v306 = vadd.f32 %v304, 1.0
      %v307 = vrcp.pop %v305
      %v308 = vmul.f32 %v297, %v307
      %v309 = vrcp.pop %v306
      %v310 = vmul.f32 %v298, %v309
      %v311 = vmul.f32 %v286, %v308
      %v312 = vmul.f32 %v287, %v310
      %313 = vst.msk [vmem:[#allocation13] sm:$0xff] %vm186, %v311
      %314 = vst.msk [vmem:[#allocation13 + $0x8] sm:$0xff] %vm186, %v312
    $region49: #{tpu_custom_call.1} parent=1 // pred_fallthru
      _
    // Predicated region
    $region50: #{tpu_custom_call.1} parent=1 // pred_check
      _
    $region51: #{tpu_custom_call.1} parent=1 // pred_check_branch
      %316 = sbr.rel (0) target = $region53
    $region52: #{tpu_custom_call.1} parent=1 // pred_region
      %s318 = ssub.s32 256, 256
      %319 = vsyncadd [#allocation6], %s318
      %s320 = sshll.u32 [#allocation13], 4
      %s321 = int_to_ptr.vmem [resolvable:$true] %s320
      %326 = dma.vmem_to_hbm [thread:$0]  %s321, 256, %s5, [#allocation6], 128, 128, 8
    $region53: #{tpu_custom_call.1} parent=1 // pred_fallthru
      _
    // Predicated region
    $region54: #{tpu_custom_call.1} parent=1 // pred_check
      _
    $region55: #{tpu_custom_call.1} parent=1 // pred_check_branch
      %328 = sbr.rel (0) target = $region57
    $region56: #{tpu_custom_call.1} parent=1 // pred_region
      %329 = dma.done [#allocation6], 256
    $region57: #{tpu_custom_call.1} parent=1 // pred_fallthru
      _
    %330 = vsyncpa [#allocation5], 1
    %331 = vsyncpa [#allocation8], 1
    %332 = vsyncpa [#allocation11], 1
    %333 = vsyncpa [#allocation6], 1

</llo_original>
